<compile_context>
chip_gen: v5e
topology: v5e:2x2
jax: 0.10.0
libtpu: 0.0.40
codegen_flags: <defaults>
</compile_context>

<pallas_src>
import jax
import jax.numpy as jnp
from jax.experimental import pallas as pl
from jax.experimental.pallas import tpu as pltpu

BN_EPS = 1e-5
OUT_LANES = 128  # lane-dense packed output width


def dual_pooling_gnn_kernel(
    ew_ref,                                   # SMEM [1, 2] : softmax(ensemble_weights)
    x_ref, ah_ref, m_ref, invc_ref,           # VMEM
    w1a_ref, b1a_ref, w1b_ref, b1b_ref,       # GIN MLP1 (BN folded into w1a/b1a)
    w2a_ref, b2a_ref, w2b_ref, b2b_ref,       # GIN MLP2 (BN folded into w2a/b2a)
    wc_ref, bc_ref,                           # fused block-diag classifier [2H,2C], [1,2C]
    out_ref,                                  # packed [G, OUT_LANES]
):
    x = x_ref[...]            # [N, D]
    A_hat = ah_ref[...]       # [N, N]  (A + I)
    M = m_ref[...]            # [G, N]  one-hot graph membership
    inv_cnt = invc_ref[...]   # [G, 1]

    # --- GINConv 1: MLP1((A+I) @ x) ; BN folded into the first Linear ---
    agg1 = jnp.dot(A_hat, x, preferred_element_type=jnp.float32)
    z1 = jnp.dot(agg1, w1a_ref[...], preferred_element_type=jnp.float32) + b1a_ref[...]
    z1 = jnp.maximum(z1, 0.0)
    h1 = jnp.dot(z1, w1b_ref[...], preferred_element_type=jnp.float32) + b1b_ref[...]

    # --- GINConv 2 + residual ---
    agg2 = jnp.dot(A_hat, h1, preferred_element_type=jnp.float32)
    z2 = jnp.dot(agg2, w2a_ref[...], preferred_element_type=jnp.float32) + b2a_ref[...]
    z2 = jnp.maximum(z2, 0.0)
    h2 = jnp.dot(z2, w2b_ref[...], preferred_element_type=jnp.float32) + b2b_ref[...] + h1

    # --- global mean pool: segment-sum via membership matmul, scaled by 1/count ---
    mean_repr = jnp.dot(M, h2, preferred_element_type=jnp.float32) * inv_cnt      # [G, H]

    # --- global max pool: single masked sublane reduction over the node axis ---
    masked = jnp.where(M[:, :, None] > 0.5, h2[None, :, :], -jnp.inf)             # [G, N, H]
    max_repr = jnp.max(masked, axis=1)                                            # [G, H]

    # --- fused classifiers: [G, 2H] @ block-diag [2H, 2C] ---
    pooled = jnp.concatenate([mean_repr, max_repr], axis=1)                       # [G, 2H]
    logits = jnp.dot(pooled, wc_ref[...],
                     preferred_element_type=jnp.float32) + bc_ref[...]            # [G, 2C]
    C = bc_ref.shape[1] // 2
    logits_mean = logits[:, :C]
    logits_max = logits[:, C:]

    # --- ensemble: weights are precomputed softmax scalars in SMEM ---
    w0 = ew_ref[0, 0]
    w1 = ew_ref[0, 1]
    ensemble = w0 * logits_mean + w1 * logits_max

    # --- single lane-dense packed store: [ens | lm | lx | mean | max | zero-pad] ---
    G = M.shape[0]
    H = mean_repr.shape[1]
    pad = out_ref.shape[1] - (3 * C + 2 * H)
    out_ref[...] = jnp.concatenate(
        [ensemble, logits_mean, logits_max, mean_repr, max_repr,
         jnp.zeros((G, pad), jnp.float32)],
        axis=1,
    )


def dual_pooling_gnn(x_emb, A, M, inv_cnt, params):
    """Wrapper: constant-folds parameters, runs one fused kernel, unpacks outputs."""
    N = A.shape[0]
    G = M.shape[0]
    H = params["w1b"].shape[1]
    C = params["wcm"].shape[1]
    assert 3 * C + 2 * H <= OUT_LANES

    # ---- one-time parameter transforms (amortized across calls / foldable under jit) ----
    # GIN with eps=0: x + A@x == (A + I) @ x
    A_hat = A + jnp.eye(N, dtype=A.dtype)

    # Fold eval-mode BatchNorm1d into the preceding Linear:
    #   w' = w * (gamma * rsqrt(var+eps)),  b' = (b - mean) * gamma * rsqrt(var+eps) + beta
    def fold_bn(wa, ba, gamma, beta, rmean, rvar):
        s = gamma * jax.lax.rsqrt(rvar + BN_EPS)          # [1, H]
        return wa * s, (ba - rmean) * s + beta

    w1a, b1a = fold_bn(params["w1a"], params["b1a"], params["g1"], params["be1"],
                       params["rm1"], params["rv1"])
    w2a, b2a = fold_bn(params["w2a"], params["b2a"], params["g2"], params["be2"],
                       params["rm2"], params["rv2"])

    # Fuse the two classifiers into one block-diagonal weight [2H, 2C] and bias [1, 2C].
    zero_blk = jnp.zeros((H, C), jnp.float32)
    wc = jnp.concatenate(
        [jnp.concatenate([params["wcm"], zero_blk], axis=1),
         jnp.concatenate([zero_blk, params["wcx"]], axis=1)], axis=0)
    bc = jnp.concatenate([params["bcm"], params["bcx"]], axis=1)

    # Precompute softmax over the 2 ensemble weights (constant parameter) -> SMEM scalars.
    ew_soft = jax.nn.softmax(params["ew"], axis=-1).astype(jnp.float32)           # [1, 2]

    inputs = [
        ew_soft,
        x_emb, A_hat, M, inv_cnt,
        w1a, b1a, params["w1b"], params["b1b"],
        w2a, b2a, params["w2b"], params["b2b"],
        wc, bc,
    ]
    in_specs = (
        [pl.BlockSpec(memory_space=pltpu.MemorySpace.SMEM)]
        + [pl.BlockSpec(memory_space=pltpu.MemorySpace.VMEM) for _ in inputs[1:]]
    )

    packed = pl.pallas_call(
        dual_pooling_gnn_kernel,
        out_shape=jax.ShapeDtypeStruct((G, OUT_LANES), jnp.float32),
        in_specs=in_specs,
        out_specs=pl.BlockSpec(memory_space=pltpu.MemorySpace.VMEM),
    )(*inputs)

    # Unpack the lane-dense slab.
    ensemble    = packed[:, 0:C]
    logits_mean = packed[:, C:2 * C]
    logits_max  = packed[:, 2 * C:3 * C]
    mean_repr   = packed[:, 3 * C:3 * C + H]
    max_repr    = packed[:, 3 * C + H:3 * C + 2 * H]
    return ensemble, logits_mean, logits_max, mean_repr, max_repr


def _reference(x_emb, A, M, inv_cnt, p):
    """Pure-JAX reference mirroring the PyTorch forward (eval mode), no folding."""
    def mlp(h, wa, ba, g, be, rm, rv, wb, bb):
        z = h @ wa + ba
        z = g * (z - rm) * jax.lax.rsqrt(rv + BN_EPS) + be
        z = jnp.maximum(z, 0.0)
        return z @ wb + bb

    h1 = mlp(x_emb + A @ x_emb, p["w1a"], p["b1a"], p["g1"], p["be1"],
             p["rm1"], p["rv1"], p["w1b"], p["b1b"])
    h2 = mlp(h1 + A @ h1, p["w2a"], p["b2a"], p["g2"], p["be2"],
             p["rm2"], p["rv2"], p["w2b"], p["b2b"]) + h1
    mean_repr = (M @ h2) * inv_cnt
    max_repr = jnp.max(jnp.where(M[:, :, None] > 0.5, h2[None], -jnp.inf), axis=1)
    lm = mean_repr @ p["wcm"] + p["bcm"]
    lx = max_repr @ p["wcx"] + p["bcx"]
    w = jax.nn.softmax(p["ew"], axis=-1)
    ens = w[:, 0:1] * lm + w[:, 1:2] * lx
    return ens, lm, lx, mean_repr, max_repr


if __name__ == "__main__":
    key = jax.random.PRNGKey(0)
    input_dim, hidden_dim, num_classes = 8, 32, 4
    nodes_per_graph, num_graphs = 8, 2
    N = nodes_per_graph * num_graphs

    ks = jax.random.split(key, 16)

    # Embedding(1, input_dim): node "features" are indices, all 0.
    emb_table = jax.random.normal(ks[0], (1, input_dim), jnp.float32)
    x_idx = jnp.zeros((N,), dtype=jnp.int32)
    x_emb = jnp.take(emb_table, x_idx, axis=0)                       # [N, D]

    # Bidirectional ring edges per graph -> dense adjacency (sum aggregation).
    srcs, dsts = [], []
    for g in range(num_graphs):
        off = g * nodes_per_graph
        for i in range(nodes_per_graph):
            j = (i + 1) % nodes_per_graph
            srcs += [off + i, off + j]
            dsts += [off + j, off + i]
    edge_index = jnp.array([srcs, dsts], dtype=jnp.int32)            # [2, E]
    A = jnp.zeros((N, N), jnp.float32).at[edge_index[1], edge_index[0]].add(1.0)

    # batch vector -> one-hot membership matrix and inverse counts.
    batch = jnp.repeat(jnp.arange(num_graphs, dtype=jnp.int32), nodes_per_graph)
    M = (batch[None, :] == jnp.arange(num_graphs)[:, None]).astype(jnp.float32)
    inv_cnt = 1.0 / jnp.sum(M, axis=1, keepdims=True)

    def lin(k, fan_in, shape):
        return jax.random.uniform(k, shape, jnp.float32, -1.0, 1.0) / jnp.sqrt(fan_in)

    params = dict(
        # GINConv1 MLP: Linear(D,H) + BN(H) + Linear(H,H)
        w1a=lin(ks[1], input_dim, (input_dim, hidden_dim)),
        b1a=lin(ks[2], input_dim, (1, hidden_dim)),
        g1=jnp.ones((1, hidden_dim), jnp.float32),
        be1=jnp.zeros((1, hidden_dim), jnp.float32),
        rm1=jnp.zeros((1, hidden_dim), jnp.float32),
        rv1=jnp.ones((1, hidden_dim), jnp.float32),
        w1b=lin(ks[3], hidden_dim, (hidden_dim, hidden_dim)),
        b1b=lin(ks[4], hidden_dim, (1, hidden_dim)),
        # GINConv2 MLP: Linear(H,H) + BN(H) + Linear(H,H)
        w2a=lin(ks[5], hidden_dim, (hidden_dim, hidden_dim)),
        b2a=lin(ks[6], hidden_dim, (1, hidden_dim)),
        g2=jnp.ones((1, hidden_dim), jnp.float32),
        be2=jnp.zeros((1, hidden_dim), jnp.float32),
        rm2=jnp.zeros((1, hidden_dim), jnp.float32),
        rv2=jnp.ones((1, hidden_dim), jnp.float32),
        w2b=lin(ks[7], hidden_dim, (hidden_dim, hidden_dim)),
        b2b=lin(ks[8], hidden_dim, (1, hidden_dim)),
        # classifiers
        wcm=lin(ks[9], hidden_dim, (hidden_dim, num_classes)),
        bcm=lin(ks[10], hidden_dim, (1, num_classes)),
        wcx=lin(ks[11], hidden_dim, (hidden_dim, num_classes)),
        bcx=lin(ks[12], hidden_dim, (1, num_classes)),
        # ensemble weights (pre-softmax), matching torch.tensor([0.6, 0.4])
        ew=jnp.array([[0.6, 0.4]], jnp.float32),
    )

    outs = jax.block_until_ready(dual_pooling_gnn(x_emb, A, M, inv_cnt, params))
    ens, lm, lx, mean_repr, max_repr = outs

    assert ens.shape == (num_graphs, num_classes)
    assert lm.shape == (num_graphs, num_classes)
    assert lx.shape == (num_graphs, num_classes)
    assert mean_repr.shape == (num_graphs, hidden_dim)
    assert max_repr.shape == (num_graphs, hidden_dim)

    ref = _reference(x_emb, A, M, inv_cnt, params)
    for got, exp in zip(outs, ref):
        assert jnp.allclose(got, exp, atol=1e-4, rtol=1e-4), "mismatch vs reference"

    print("KERNEL_OK")
</pallas_src>

<mosaic_0001>
module attributes {stable_mosaic.version = 11 : i64} {
  func.func @dual_pooling_gnn_kernel(%arg0: memref<1x2xf32, #tpu.memory_space<smem>>, %arg1: memref<16x8xf32, #tpu.memory_space<vmem>>, %arg2: memref<16x16xf32, #tpu.memory_space<vmem>>, %arg3: memref<2x16xf32, #tpu.memory_space<vmem>>, %arg4: memref<2x1xf32, #tpu.memory_space<vmem>>, %arg5: memref<8x32xf32, #tpu.memory_space<vmem>>, %arg6: memref<1x32xf32, #tpu.memory_space<vmem>>, %arg7: memref<32x32xf32, #tpu.memory_space<vmem>>, %arg8: memref<1x32xf32, #tpu.memory_space<vmem>>, %arg9: memref<32x32xf32, #tpu.memory_space<vmem>>, %arg10: memref<1x32xf32, #tpu.memory_space<vmem>>, %arg11: memref<32x32xf32, #tpu.memory_space<vmem>>, %arg12: memref<1x32xf32, #tpu.memory_space<vmem>>, %arg13: memref<64x8xf32, #tpu.memory_space<vmem>>, %arg14: memref<1x8xf32, #tpu.memory_space<vmem>>, %arg15: memref<2x128xf32, #tpu.memory_space<vmem>>) attributes {dimension_semantics = [], scalar_prefetch = 0 : i64, scratch_operands = 0 : i64, tpu.core_type = #tpu.core_type<tc>} {
    %c0 = arith.constant 0 : index
    %c0_0 = arith.constant 0 : index
    %0 = vector.load %arg1[%c0, %c0_0] : memref<16x8xf32, #tpu.memory_space<vmem>>, vector<16x8xf32>
    %c0_1 = arith.constant 0 : index
    %c0_2 = arith.constant 0 : index
    %1 = vector.load %arg2[%c0_1, %c0_2] : memref<16x16xf32, #tpu.memory_space<vmem>>, vector<16x16xf32>
    %c0_3 = arith.constant 0 : index
    %c0_4 = arith.constant 0 : index
    %2 = vector.load %arg3[%c0_3, %c0_4] : memref<2x16xf32, #tpu.memory_space<vmem>>, vector<2x16xf32>
    %c0_5 = arith.constant 0 : index
    %c0_6 = arith.constant 0 : index
    %3 = vector.load %arg4[%c0_5, %c0_6] : memref<2x1xf32, #tpu.memory_space<vmem>>, vector<2x1xf32>
    %cst = arith.constant dense<0.000000e+00> : vector<16x8xf32>
    %4 = tpu.matmul %1, %0, %cst {dimension_numbers = #tpu.dot_dimension_numbers<[1], [0], [0], [1], [0, 0, 1, 1], [], []>} : vector<16x16xf32>, vector<16x8xf32>, vector<16x8xf32> -> vector<16x8xf32>
    %c0_7 = arith.constant 0 : index
    %c0_8 = arith.constant 0 : index
    %5 = vector.load %arg5[%c0_7, %c0_8] : memref<8x32xf32, #tpu.memory_space<vmem>>, vector<8x32xf32>
    %cst_9 = arith.constant dense<0.000000e+00> : vector<16x32xf32>
    %6 = tpu.matmul %4, %5, %cst_9 {dimension_numbers = #tpu.dot_dimension_numbers<[1], [0], [0], [1], [0, 0, 1, 1], [], []>} : vector<16x8xf32>, vector<8x32xf32>, vector<16x32xf32> -> vector<16x32xf32>
    %c0_10 = arith.constant 0 : index
    %c0_11 = arith.constant 0 : index
    %7 = vector.load %arg6[%c0_10, %c0_11] : memref<1x32xf32, #tpu.memory_space<vmem>>, vector<1x32xf32>
    %8 = vector.broadcast %7 : vector<1x32xf32> to vector<16x32xf32>
    %9 = arith.addf %6, %8 : vector<16x32xf32>
    %cst_12 = arith.constant 0.000000e+00 : f32
    %10 = vector.broadcast %cst_12 : f32 to vector<16x32xf32>
    %11 = arith.maximumf %9, %10 : vector<16x32xf32>
    %c0_13 = arith.constant 0 : index
    %c0_14 = arith.constant 0 : index
    %12 = vector.load %arg7[%c0_13, %c0_14] : memref<32x32xf32, #tpu.memory_space<vmem>>, vector<32x32xf32>
    %cst_15 = arith.constant dense<0.000000e+00> : vector<16x32xf32>
    %13 = tpu.matmul %11, %12, %cst_15 {dimension_numbers = #tpu.dot_dimension_numbers<[1], [0], [0], [1], [0, 0, 1, 1], [], []>} : vector<16x32xf32>, vector<32x32xf32>, vector<16x32xf32> -> vector<16x32xf32>
    %c0_16 = arith.constant 0 : index
    %c0_17 = arith.constant 0 : index
    %14 = vector.load %arg8[%c0_16, %c0_17] : memref<1x32xf32, #tpu.memory_space<vmem>>, vector<1x32xf32>
    %15 = vector.broadcast %14 : vector<1x32xf32> to vector<16x32xf32>
    %16 = arith.addf %13, %15 : vector<16x32xf32>
    %cst_18 = arith.constant dense<0.000000e+00> : vector<16x32xf32>
    %17 = tpu.matmul %1, %16, %cst_18 {dimension_numbers = #tpu.dot_dimension_numbers<[1], [0], [0], [1], [0, 0, 1, 1], [], []>} : vector<16x16xf32>, vector<16x32xf32>, vector<16x32xf32> -> vector<16x32xf32>
    %c0_19 = arith.constant 0 : index
    %c0_20 = arith.constant 0 : index
    %18 = vector.load %arg9[%c0_19, %c0_20] : memref<32x32xf32, #tpu.memory_space<vmem>>, vector<32x32xf32>
    %cst_21 = arith.constant dense<0.000000e+00> : vector<16x32xf32>
    %19 = tpu.matmul %17, %18, %cst_21 {dimension_numbers = #tpu.dot_dimension_numbers<[1], [0], [0], [1], [0, 0, 1, 1], [], []>} : vector<16x32xf32>, vector<32x32xf32>, vector<16x32xf32> -> vector<16x32xf32>
    %c0_22 = arith.constant 0 : index
    %c0_23 = arith.constant 0 : index
    %20 = vector.load %arg10[%c0_22, %c0_23] : memref<1x32xf32, #tpu.memory_space<vmem>>, vector<1x32xf32>
    %21 = vector.broadcast %20 : vector<1x32xf32> to vector<16x32xf32>
    %22 = arith.addf %19, %21 : vector<16x32xf32>
    %cst_24 = arith.constant 0.000000e+00 : f32
    %23 = vector.broadcast %cst_24 : f32 to vector<16x32xf32>
    %24 = arith.maximumf %22, %23 : vector<16x32xf32>
    %c0_25 = arith.constant 0 : index
    %c0_26 = arith.constant 0 : index
    %25 = vector.load %arg11[%c0_25, %c0_26] : memref<32x32xf32, #tpu.memory_space<vmem>>, vector<32x32xf32>
    %cst_27 = arith.constant dense<0.000000e+00> : vector<16x32xf32>
    %26 = tpu.matmul %24, %25, %cst_27 {dimension_numbers = #tpu.dot_dimension_numbers<[1], [0], [0], [1], [0, 0, 1, 1], [], []>} : vector<16x32xf32>, vector<32x32xf32>, vector<16x32xf32> -> vector<16x32xf32>
    %c0_28 = arith.constant 0 : index
    %c0_29 = arith.constant 0 : index
    %27 = vector.load %arg12[%c0_28, %c0_29] : memref<1x32xf32, #tpu.memory_space<vmem>>, vector<1x32xf32>
    %28 = vector.broadcast %27 : vector<1x32xf32> to vector<16x32xf32>
    %29 = arith.addf %26, %28 : vector<16x32xf32>
    %30 = arith.addf %29, %16 : vector<16x32xf32>
    %cst_30 = arith.constant dense<0.000000e+00> : vector<2x32xf32>
    %31 = tpu.matmul %2, %30, %cst_30 {dimension_numbers = #tpu.dot_dimension_numbers<[1], [0], [0], [1], [0, 0, 1, 1], [], []>} : vector<2x16xf32>, vector<16x32xf32>, vector<2x32xf32> -> vector<2x32xf32>
    %32 = vector.broadcast %3 : vector<2x1xf32> to vector<2x32xf32>
    %33 = arith.mulf %31, %32 : vector<2x32xf32>
    %34 = vector.shape_cast %2 : vector<2x16xf32> to vector<2x16x1xf32>
    %cst_31 = arith.constant 5.000000e-01 : f32
    %35 = vector.broadcast %cst_31 : f32 to vector<2x16x1xf32>
    %36 = arith.cmpf ogt, %34, %35 : vector<2x16x1xf32>
    %37 = vector.shape_cast %30 : vector<16x32xf32> to vector<1x16x32xf32>
    %cst_32 = arith.constant 0xFF800000 : f32
    %38 = vector.shape_cast %36 : vector<2x16x1xi1> to vector<2x16x1xi1>
    %39 = vector.broadcast %38 : vector<2x16x1xi1> to vector<2x16x32xi1>
    %40 = vector.shape_cast %37 : vector<1x16x32xf32> to vector<1x16x32xf32>
    %41 = vector.broadcast %40 : vector<1x16x32xf32> to vector<2x16x32xf32>
    %42 = vector.broadcast %cst_32 : f32 to vector<2x16x32xf32>
    %43 = arith.select %39, %41, %42 : vector<2x16x32xi1>, vector<2x16x32xf32>
    %cst_33 = arith.constant dense<0xFF800000> : vector<2x32xf32>
    %44 = vector.multi_reduction <maximumf>, %43, %cst_33 [1] : vector<2x16x32xf32> to vector<2x32xf32>
    %45 = tpu.concatenate %33, %44 in 1 : vector<2x32xf32>, vector<2x32xf32> -> vector<2x64xf32>
    %c0_34 = arith.constant 0 : index
    %c0_35 = arith.constant 0 : index
    %46 = vector.load %arg13[%c0_34, %c0_35] : memref<64x8xf32, #tpu.memory_space<vmem>>, vector<64x8xf32>
    %cst_36 = arith.constant dense<0.000000e+00> : vector<2x8xf32>
    %47 = tpu.matmul %45, %46, %cst_36 {dimension_numbers = #tpu.dot_dimension_numbers<[1], [0], [0], [1], [0, 0, 1, 1], [], []>} : vector<2x64xf32>, vector<64x8xf32>, vector<2x8xf32> -> vector<2x8xf32>
    %c0_37 = arith.constant 0 : index
    %c0_38 = arith.constant 0 : index
    %48 = vector.load %arg14[%c0_37, %c0_38] : memref<1x8xf32, #tpu.memory_space<vmem>>, vector<1x8xf32>
    %49 = vector.broadcast %48 : vector<1x8xf32> to vector<2x8xf32>
    %50 = arith.addf %47, %49 : vector<2x8xf32>
    %51 = vector.extract_strided_slice %50 {offsets = [0, 0], sizes = [2, 4], strides = [1, 1]} : vector<2x8xf32> to vector<2x4xf32>
    %52 = vector.extract_strided_slice %50 {offsets = [0, 4], sizes = [2, 4], strides = [1, 1]} : vector<2x8xf32> to vector<2x4xf32>
    %c0_39 = arith.constant 0 : index
    %c0_40 = arith.constant 0 : index
    %53 = memref.load %arg0[%c0_39, %c0_40] : memref<1x2xf32, #tpu.memory_space<smem>>
    %c0_41 = arith.constant 0 : index
    %c1 = arith.constant 1 : index
    %54 = memref.load %arg0[%c0_41, %c1] : memref<1x2xf32, #tpu.memory_space<smem>>
    %55 = vector.broadcast %53 : f32 to vector<2x4xf32>
    %56 = arith.mulf %55, %51 : vector<2x4xf32>
    %57 = vector.broadcast %54 : f32 to vector<2x4xf32>
    %58 = arith.mulf %57, %52 : vector<2x4xf32>
    %59 = arith.addf %56, %58 : vector<2x4xf32>
    %cst_42 = arith.constant 0.000000e+00 : f32
    %60 = vector.broadcast %cst_42 : f32 to vector<2x52xf32>
    %61 = tpu.concatenate %59, %51, %52, %33, %44, %60 in 1 : vector<2x4xf32>, vector<2x4xf32>, vector<2x4xf32>, vector<2x32xf32>, vector<2x32xf32>, vector<2x52xf32> -> vector<2x128xf32>
    %c0_43 = arith.constant 0 : index
    %c0_44 = arith.constant 0 : index
    %62 = vector.load %arg15[%c0_43, %c0_44] : memref<2x128xf32, #tpu.memory_space<vmem>>, vector<2x128xf32>
    tpu.vector_store %arg15[%c0_43, %c0_44], %61 {strides = array<i32>} : memref<2x128xf32, #tpu.memory_space<vmem>>, vector<2x128xf32>,
    return
  }
}

</mosaic_0001>

<llo_original>
// kernel: tpu_custom_call.1
$region0: #{tpu_custom_call.1}
  #allocation0 [shape = 'u32[]', space=smem, size = 0x4, offset = 0x4, fixed_abs, tag = 'smem constant byte address 0x4 - core index']
  #allocation1 [shape = 'u32[72,128]{1,0:T(1,128)}', space=vmem, size = 0x9000, scoped, tag = 'internal scratch']
  %s0 = inlined_call_operand.vmem [shape: f32[1,2], index: 0, kind: input, shape index: {}]
  %s1 = inlined_call_operand.vmem [shape: f32[16,8], index: 1, kind: input, shape index: {}]
  %s2 = inlined_call_operand.vmem [shape: f32[16,16], index: 2, kind: input, shape index: {}]
  %s3 = inlined_call_operand.vmem [shape: f32[2,16], index: 3, kind: input, shape index: {}]
  %s4 = inlined_call_operand.vmem [shape: f32[2,1], index: 4, kind: input, shape index: {}]
  %s5 = inlined_call_operand.vmem [shape: f32[8,32], index: 5, kind: input, shape index: {}]
  %s6 = inlined_call_operand.vmem [shape: f32[1,32], index: 6, kind: input, shape index: {}]
  %s7 = inlined_call_operand.vmem [shape: f32[32,32], index: 7, kind: input, shape index: {}]
  %s8 = inlined_call_operand.vmem [shape: f32[1,32], index: 8, kind: input, shape index: {}]
  %s9 = inlined_call_operand.vmem [shape: f32[32,32], index: 9, kind: input, shape index: {}]
  %s10 = inlined_call_operand.vmem [shape: f32[1,32], index: 10, kind: input, shape index: {}]
  %s11 = inlined_call_operand.hbm [shape: f32[32,32], index: 11, kind: input, shape index: {}]
  %s12 = inlined_call_operand.vmem [shape: f32[1,32], index: 12, kind: input, shape index: {}]
  %s13 = inlined_call_operand.vmem [shape: f32[64,8], index: 13, kind: input, shape index: {}]
  %s14 = inlined_call_operand.vmem [shape: f32[1,8], index: 14, kind: input, shape index: {}]
  %s15 = inlined_call_operand.hbm [shape: f32[2,128], index: 15, kind: output, shape index: {}]
  %s16 = sld [smem:[#allocation0]]
  $region78: #{tpu_custom_call.1} parent=0
    _
  %s18 = ssub.s32 1, %s16
  %s19 = scalar_select 0, %s18, %s16
  $region1: #{tpu_custom_call.1} parent=0
    #allocation2 [shape = 'u8[512]{0}', space=smem, size = 0x200, scoped, tag = 'input window, operand 0, single buffered']
    #allocation3 [shape = 's32[1]{0}', space=sflag, size = 0x4, scoped, tag = 'scoped memory for tpu_custom_call.1']
    #allocation4 [shape = 's32[1]{0}', space=sflag, size = 0x4, scoped, tag = 'scoped memory for tpu_custom_call.1']
    #allocation5 [shape = 's32[1]{0}', space=sflag, size = 0x4, scoped, tag = 'scoped memory for tpu_custom_call.1']
    #allocation6 [shape = 'u8[16384]{0}', space=vmem, size = 0x4000, scoped, tag = 'input window, operand 11, single buffered']
    #allocation7 [shape = 'u8[1024]{0}', space=vmem, size = 0x400, scoped, tag = 'output window, operand 0, single buffered']
    %20 = vsyncpa [#allocation5], 0
    %21 = vsyncpa [#allocation3], 0
    %22 = vsyncpa [#allocation4], 0
    // Predicated region
    $region2: #{tpu_custom_call.1} parent=1 // pred_check
      _
    $region3: #{tpu_custom_call.1} parent=1 // pred_check_branch
      %24 = sbr.rel (0) target = $region5
    $region4: #{tpu_custom_call.1} parent=1 // pred_region
      %26 = vsyncadd [#allocation5], 0
      %s28 = sshll.u32 %s0, 4
      %s29 = int_to_ptr.vmem [resolvable:$true] %s28
      %31 = dma.vmem_to_smem %s29, 16, [#allocation2], [#allocation5]
    $region5: #{tpu_custom_call.1} parent=1 // pred_fallthru
      _
    // Predicated region
    $region6: #{tpu_custom_call.1} parent=1 // pred_check
      _
    $region7: #{tpu_custom_call.1} parent=1 // pred_check_branch
      %33 = sbr.rel (0) target = $region9
    $region8: #{tpu_custom_call.1} parent=1 // pred_region
      _
    $region9: #{tpu_custom_call.1} parent=1 // pred_fallthru
      _
    // Predicated region
    $region10: #{tpu_custom_call.1} parent=1 // pred_check
      _
    $region11: #{tpu_custom_call.1} parent=1 // pred_check_branch
      %35 = sbr.rel (0) target = $region13
    $region12: #{tpu_custom_call.1} parent=1 // pred_region
      _
    $region13: #{tpu_custom_call.1} parent=1 // pred_fallthru
      _
    // Predicated region
    $region14: #{tpu_custom_call.1} parent=1 // pred_check
      _
    $region15: #{tpu_custom_call.1} parent=1 // pred_check_branch
      %37 = sbr.rel (0) target = $region17
    $region16: #{tpu_custom_call.1} parent=1 // pred_region
      _
    $region17: #{tpu_custom_call.1} parent=1 // pred_fallthru
      _
    // Predicated region
    $region18: #{tpu_custom_call.1} parent=1 // pred_check
      _
    $region19: #{tpu_custom_call.1} parent=1 // pred_check_branch
      %39 = sbr.rel (0) target = $region21
    $region20: #{tpu_custom_call.1} parent=1 // pred_region
      _
    $region21: #{tpu_custom_call.1} parent=1 // pred_fallthru
      _
    // Predicated region
    $region22: #{tpu_custom_call.1} parent=1 // pred_check
      _
    $region23: #{tpu_custom_call.1} parent=1 // pred_check_branch
      %41 = sbr.rel (0) target = $region25
    $region24: #{tpu_custom_call.1} parent=1 // pred_region
      _
    $region25: #{tpu_custom_call.1} parent=1 // pred_fallthru
      _
    // Predicated region
    $region26: #{tpu_custom_call.1} parent=1 // pred_check
      _
    $region27: #{tpu_custom_call.1} parent=1 // pred_check_branch
      %43 = sbr.rel (0) target = $region29
    $region28: #{tpu_custom_call.1} parent=1 // pred_region
      _
    $region29: #{tpu_custom_call.1} parent=1 // pred_fallthru
      _
    // Predicated region
    $region30: #{tpu_custom_call.1} parent=1 // pred_check
      _
    $region31: #{tpu_custom_call.1} parent=1 // pred_check_branch
      %45 = sbr.rel (0) target = $region33
    $region32: #{tpu_custom_call.1} parent=1 // pred_region
      _
    $region33: #{tpu_custom_call.1} parent=1 // pred_fallthru
      _
    // Predicated region
    $region34: #{tpu_custom_call.1} parent=1 // pred_check
      _
    $region35: #{tpu_custom_call.1} parent=1 // pred_check_branch
      %47 = sbr.rel (0) target = $region37
    $region36: #{tpu_custom_call.1} parent=1 // pred_region
      _
    $region37: #{tpu_custom_call.1} parent=1 // pred_fallthru
      _
    // Predicated region
    $region38: #{tpu_custom_call.1} parent=1 // pred_check
      _
    $region39: #{tpu_custom_call.1} parent=1 // pred_check_branch
      %49 = sbr.rel (0) target = $region41
    $region40: #{tpu_custom_call.1} parent=1 // pred_region
      _
    $region41: #{tpu_custom_call.1} parent=1 // pred_fallthru
      _
    // Predicated region
    $region42: #{tpu_custom_call.1} parent=1 // pred_check
      _
    $region43: #{tpu_custom_call.1} parent=1 // pred_check_branch
      %51 = sbr.rel (0) target = $region45
    $region44: #{tpu_custom_call.1} parent=1 // pred_region
      _
    $region45: #{tpu_custom_call.1} parent=1 // pred_fallthru
      _
    // Predicated region
    $region46: #{tpu_custom_call.1} parent=1 // pred_check
      _
    $region47: #{tpu_custom_call.1} parent=1 // pred_check_branch
      %53 = sbr.rel (0) target = $region49
    $region48: #{tpu_custom_call.1} parent=1 // pred_region
      %55 = vsyncadd [#allocation3], 0
      %s56 = sshll.u32 %s11, 4
      %s57 = int_to_ptr.hbm [resolvable:$true] %s56
      %s58 = sshll.u32 [#allocation6], 4
      %s59 = int_to_ptr.vmem [resolvable:$true] %s58
      %64 = dma.hbm_to_vmem [thread:$0]  %s57, 512, %s59, [#allocation3], 128, 128, 8
    $region49: #{tpu_custom_call.1} parent=1 // pred_fallthru
      _
    // Predicated region
    $region50: #{tpu_custom_call.1} parent=1 // pred_check
      _
    $region51: #{tpu_custom_call.1} parent=1 // pred_check_branch
      %66 = sbr.rel (0) target = $region53
    $region52: #{tpu_custom_call.1} parent=1 // pred_region
      _
    $region53: #{tpu_custom_call.1} parent=1 // pred_fallthru
      _
    // Predicated region
    $region54: #{tpu_custom_call.1} parent=1 // pred_check
      _
    $region55: #{tpu_custom_call.1} parent=1 // pred_check_branch
      %68 = sbr.rel (0) target = $region57
    $region56: #{tpu_custom_call.1} parent=1 // pred_region
      _
    $region57: #{tpu_custom_call.1} parent=1 // pred_fallthru
      _
    // Predicated region
    $region58: #{tpu_custom_call.1} parent=1 // pred_check
      _
    $region59: #{tpu_custom_call.1} parent=1 // pred_check_branch
      %70 = sbr.rel (0) target = $region61
    $region60: #{tpu_custom_call.1} parent=1 // pred_region
      _
    $region61: #{tpu_custom_call.1} parent=1 // pred_fallthru
      _
    // Predicated region
    $region62: #{tpu_custom_call.1} parent=1 // pred_check
      _
    $region63: #{tpu_custom_call.1} parent=1 // pred_check_branch
      %72 = sbr.rel (0) target = $region65
    $region64: #{tpu_custom_call.1} parent=1 // pred_region
      %74 = dma.done [#allocation5], 16
    $region65: #{tpu_custom_call.1} parent=1 // pred_fallthru
      _
    // Predicated region
    $region66: #{tpu_custom_call.1} parent=1 // pred_check
      _
    $region67: #{tpu_custom_call.1} parent=1 // pred_check_branch
      %76 = sbr.rel (0) target = $region69
    $region68: #{tpu_custom_call.1} parent=1 // pred_region
      %78 = dma.done [#allocation3], 512
    $region69: #{tpu_custom_call.1} parent=1 // pred_fallthru
      _
    %79 = sfence
    %v80 = vld [vmem:[%s1] sm:$0xff]
    %v81 = vld [vmem:[%s1 + $0x8] sm:$0xff]
    %v82 = vld [vmem:[%s2] sm:$0xff]
    %v83 = vld [vmem:[%s2 + $0x8] sm:$0xff]
    %v84 = vld [vmem:[%s3] sm:$0x3]
    %v85 = vld [vmem:[%s4] sm:$0x3]
    %vm86 = vcmask 130048
    %v88 = vsel %vm86, %v82, 0
    %v91 = vsel %vm86, %v83, 0
    %93 = vmatpush.msra.mxu0 0.0
    %94 = vmatpush.msra.mxu0 0.0
    %95 = vmatpush.msra.mxu0 0.0
    %96 = vmatpush.msra.mxu0 0.0
    %97 = vmatpush.msra.mxu0 0.0
    %98 = vmatpush.msra.mxu0 0.0
    %99 = vmatpush.msra.mxu0 0.0
    %100 = vmatpush.msra.mxu0 0.0
    %101 = vmatpush.msra.mxu0 0.0
    %102 = vmatpush.msra.mxu0 0.0
    %103 = vmatpush.msra.mxu0 0.0
    %104 = vmatpush.msra.mxu0 0.0
    %105 = vmatpush.msra.mxu0 0.0
    %106 = vmatpush.msra.mxu0 0.0
    %107 = vmatpush.msra.mxu0 %v81
    %108 = vmatpush.msra.mxu0 %v80
    %109 = vmatmul.f32.gmra.mxu0 %v88
    %v110 = vpop.f32.mrf.mxu0
    %v111 = vadd.f32 0.0, %v110
    %112 = vmatmul.f32.gmra.mxu0 %v91
    %v113 = vpop.f32.mrf.mxu0
    %v114 = vadd.f32 0.0, %v113
    %115 = vdwg.mxu0
    %v116 = vld [vmem:[%s5] sm:$0xff]
    %v117 = vld [vmem:[%s6] sm:$0x1]
    %v119 = vperm.slane %v117, 0
    %vm121 = vcmask 64512
    %v123 = vsel %vm121, %v111, 0
    %v126 = vsel %vm121, %v114, 0
    %128 = vmatpush.msra.mxu0 0.0
    %129 = vmatpush.msra.mxu0 0.0
    %130 = vmatpush.msra.mxu0 0.0
    %131 = vmatpush.msra.mxu0 0.0
    %132 = vmatpush.msra.mxu0 0.0
    %133 = vmatpush.msra.mxu0 0.0
    %134 = vmatpush.msra.mxu0 0.0
    %135 = vmatpush.msra.mxu0 0.0
    %136 = vmatpush.msra.mxu0 0.0
    %137 = vmatpush.msra.mxu0 0.0
    %138 = vmatpush.msra.mxu0 0.0
    %139 = vmatpush.msra.mxu0 0.0
    %140 = vmatpush.msra.mxu0 0.0
    %141 = vmatpush.msra.mxu0 0.0
    %142 = vmatpush.msra.mxu0 0.0
    %143 = vmatpush.msra.mxu0 %v116
    %144 = vmatmul.f32.gmra.mxu0 %v123
    %v145 = vpop.f32.mrf.mxu0
    %v146 = vadd.f32 %v119, %v145
    %147 = vmatmul.f32.gmra.mxu0 %v126
    %v148 = vpop.f32.mrf.mxu0
    %v149 = vadd.f32 %v119, %v148
    %150 = vdwg.mxu0
    %v151 = vmax.f32 %v146, 0.0
    %v152 = vmax.f32 %v149, 0.0
    %v153 = vld [vmem:[%s7] sm:$0xff]
    %v154 = vld [vmem:[%s7 + $0x8] sm:$0xff]
    %v155 = vld [vmem:[%s7 + $0x10] sm:$0xff]
    %v156 = vld [vmem:[%s7 + $0x18] sm:$0xff]
    %v157 = vld [vmem:[%s8] sm:$0x1]
    %v159 = vperm.slane %v157, 0
    %vm161 = vcmask 261120
    %v163 = vsel %vm161, %v151, 0
    %v166 = vsel %vm161, %v152, 0
    %168 = vmatpush.msra.mxu0 0.0
    %169 = vmatpush.msra.mxu0 0.0
    %170 = vmatpush.msra.mxu0 0.0
    %171 = vmatpush.msra.mxu0 0.0
    %172 = vmatpush.msra.mxu0 0.0
    %173 = vmatpush.msra.mxu0 0.0
    %174 = vmatpush.msra.mxu0 0.0
    %175 = vmatpush.msra.mxu0 0.0
    %176 = vmatpush.msra.mxu0 0.0
    %177 = vmatpush.msra.mxu0 0.0
    %178 = vmatpush.msra.mxu0 0.0
    %179 = vmatpush.msra.mxu0 0.0
    %180 = vmatpush.msra.mxu0 %v156
    %181 = vmatpush.msra.mxu0 %v155
    %182 = vmatpush.msra.mxu0 %v154
    %183 = vmatpush.msra.mxu0 %v153
    %184 = vmatmul.f32.gmra.mxu0 %v163
    %v185 = vpop.f32.mrf.mxu0
    %v186 = vadd.f32 %v159, %v185
    %187 = vmatmul.f32.gmra.mxu0 %v166
    %v188 = vpop.f32.mrf.mxu0
    %v189 = vadd.f32 %v159, %v188
    %190 = vdwg.mxu0
    %191 = vmatpush.msra.mxu0 0.0
    %192 = vmatpush.msra.mxu0 0.0
    %193 = vmatpush.msra.mxu0 0.0
    %194 = vmatpush.msra.mxu0 0.0
    %195 = vmatpush.msra.mxu0 0.0
    %196 = vmatpush.msra.mxu0 0.0
    %197 = vmatpush.msra.mxu0 0.0
    %198 = vmatpush.msra.mxu0 0.0
    %199 = vmatpush.msra.mxu0 0.0
    %200 = vmatpush.msra.mxu0 0.0
    %201 = vmatpush.msra.mxu0 0.0
    %202 = vmatpush.msra.mxu0 0.0
    %203 = vmatpush.msra.mxu0 0.0
    %204 = vmatpush.msra.mxu0 0.0
    %205 = vmatpush.msra.mxu0 %v189
    %206 = vmatpush.msra.mxu0 %v186
    %207 = vmatmul.f32.gmra.mxu0 %v88
    %v208 = vpop.f32.mrf.mxu0
    %v209 = vadd.f32 0.0, %v208
    %210 = vmatmul.f32.gmra.mxu0 %v91
    %v211 = vpop.f32.mrf.mxu0
    %v212 = vadd.f32 0.0, %v211
    %213 = vdwg.mxu0
    %v214 = vld [vmem:[%s9] sm:$0xff]
    %v215 = vld [vmem:[%s9 + $0x8] sm:$0xff]
    %v216 = vld [vmem:[%s9 + $0x10] sm:$0xff]
    %v217 = vld [vmem:[%s9 + $0x18] sm:$0xff]
    %v218 = vld [vmem:[%s10] sm:$0x1]
    %v220 = vperm.slane %v218, 0
    %v223 = vsel %vm161, %v209, 0
    %v226 = vsel %vm161, %v212, 0
    %228 = vmatpush.msra.mxu0 0.0
    %229 = vmatpush.msra.mxu0 0.0
    %230 = vmatpush.msra.mxu0 0.0
    %231 = vmatpush.msra.mxu0 0.0
    %232 = vmatpush.msra.mxu0 0.0
    %233 = vmatpush.msra.mxu0 0.0
    %234 = vmatpush.msra.mxu0 0.0
    %235 = vmatpush.msra.mxu0 0.0
    %236 = vmatpush.msra.mxu0 0.0
    %237 = vmatpush.msra.mxu0 0.0
    %238 = vmatpush.msra.mxu0 0.0
    %239 = vmatpush.msra.mxu0 0.0
    %240 = vmatpush.msra.mxu0 %v217
    %241 = vmatpush.msra.mxu0 %v216
    %242 = vmatpush.msra.mxu0 %v215
    %243 = vmatpush.msra.mxu0 %v214
    %244 = vmatmul.f32.gmra.mxu0 %v223
    %v245 = vpop.f32.mrf.mxu0
    %v246 = vadd.f32 %v220, %v245
    %247 = vmatmul.f32.gmra.mxu0 %v226
    %v248 = vpop.f32.mrf.mxu0
    %v249 = vadd.f32 %v220, %v248
    %250 = vdwg.mxu0
    %v251 = vmax.f32 %v246, 0.0
    %v252 = vmax.f32 %v249, 0.0
    %v253 = vld [vmem:[#allocation6] sm:$0xff]
    %v254 = vld [vmem:[#allocation6 + $0x8] sm:$0xff]
    %v255 = vld [vmem:[#allocation6 + $0x10] sm:$0xff]
    %v256 = vld [vmem:[#allocation6 + $0x18] sm:$0xff]
    %v257 = vld [vmem:[%s12] sm:$0x1]
    %v259 = vperm.slane %v257, 0
    %v262 = vsel %vm161, %v251, 0
    %v265 = vsel %vm161, %v252, 0
    %267 = vmatpush.msra.mxu0 0.0
    %268 = vmatpush.msra.mxu0 0.0
    %269 = vmatpush.msra.mxu0 0.0
    %270 = vmatpush.msra.mxu0 0.0
    %271 = vmatpush.msra.mxu0 0.0
    %272 = vmatpush.msra.mxu0 0.0
    %273 = vmatpush.msra.mxu0 0.0
    %274 = vmatpush.msra.mxu0 0.0
    %275 = vmatpush.msra.mxu0 0.0
    %276 = vmatpush.msra.mxu0 0.0
    %277 = vmatpush.msra.mxu0 0.0
    %278 = vmatpush.msra.mxu0 0.0
    %279 = vmatpush.msra.mxu0 %v256
    %280 = vmatpush.msra.mxu0 %v255
    %281 = vmatpush.msra.mxu0 %v254
    %282 = vmatpush.msra.mxu0 %v253
    %283 = vmatmul.f32.gmra.mxu0 %v262
    %v284 = vpop.f32.mrf.mxu0
    %v285 = vadd.f32 %v259, %v284
    %286 = vmatmul.f32.gmra.mxu0 %v265
    %v287 = vpop.f32.mrf.mxu0
    %v288 = vadd.f32 %v259, %v287
    %289 = vdwg.mxu0
    %v290 = vadd.f32 %v285, %v186
    %v291 = vadd.f32 %v288, %v189
    %v293 = vsel %vm86, %v84, 0
    %295 = vmatpush.msra.mxu0 0.0
    %296 = vmatpush.msra.mxu0 0.0
    %297 = vmatpush.msra.mxu0 0.0
    %298 = vmatpush.msra.mxu0 0.0
    %299 = vmatpush.msra.mxu0 0.0
    %300 = vmatpush.msra.mxu0 0.0
    %301 = vmatpush.msra.mxu0 0.0
    %302 = vmatpush.msra.mxu0 0.0
    %303 = vmatpush.msra.mxu0 0.0
    %304 = vmatpush.msra.mxu0 0.0
    %305 = vmatpush.msra.mxu0 0.0
    %306 = vmatpush.msra.mxu0 0.0
    %307 = vmatpush.msra.mxu0 0.0
    %308 = vmatpush.msra.mxu0 0.0
    %309 = vmatpush.msra.mxu0 %v291
    %310 = vmatpush.msra.mxu0 %v290
    %311 = vmatmul.f32.gmra.mxu0 %v293
    %v312 = vpop.f32.mrf.mxu0
    %v313 = vadd.f32 0.0, %v312
    %314 = vdwg.mxu0
    %316 = vset.pattern.permute.xlu0 0
    %317 = vperm.xlu0 %316, %v85
    %v318 = vpop.permute.xlu0 %317
    %v320 = vmul.f32 %v313, %v318
    %v321 = vperm.slane %v84, 0
    %v322 = vlaneseq
    %v323 = vshrl.u32 %v322, 7
    %325 = vset.pattern.permute.xlu0 %v323
    %326 = vperm.xlu0 %325, %v321
    %v327 = vpop.permute.xlu0 %326
    %v328 = vlaneseq
    %v329 = vshrl.u32 %v328, 7
    %v330 = vadd.s32 %v329, 8
    %331 = vset.pattern.permute.xlu0 %v330
    %332 = vperm.xlu0 %331, %v321
    %v333 = vpop.permute.xlu0 %332
    %v334 = vperm.slane %v84, 1
    %v335 = vlaneseq
    %v336 = vshrl.u32 %v335, 7
    %338 = vset.pattern.permute.xlu0 %v336
    %339 = vperm.xlu0 %338, %v334
    %v340 = vpop.permute.xlu0 %339
    %v341 = vlaneseq
    %v342 = vshrl.u32 %v341, 7
    %v343 = vadd.s32 %v342, 8
    %344 = vset.pattern.permute.xlu0 %v343
    %345 = vperm.xlu0 %344, %v334
    %v346 = vpop.permute.xlu0 %345
    %vm347 = vcmp.gt.f32.partialorder %v327, 0.5
    %vm348 = vcmp.gt.f32.partialorder %v333, 0.5
    %vm349 = vcmp.gt.f32.partialorder %v340, 0.5
    %vm350 = vcmp.gt.f32.partialorder %v346, 0.5
    %v351 = vsel %vm347, 1, 0
    %v352 = vsel %vm348, 1, 0
    %v353 = vsel %vm349, 1, 0
    %v354 = vsel %vm350, 1, 0
    %vm355 = vcmp.eq.s32.totalorder %v351, 1
    %vm356 = vcmp.eq.s32.totalorder %v352, 1
    %vm357 = vcmp.eq.s32.totalorder %v353, 1
    %vm358 = vcmp.eq.s32.totalorder %v354, 1
    %v359 = vsel %vm355, %v290, -inf
    %v360 = vsel %vm356, %v291, -inf
    %v361 = vsel %vm357, %v290, -inf
    %v362 = vsel %vm358, %v291, -inf
    %v363 = vsel %vm161, %v359, -inf
    %v364 = vsel %vm161, %v360, -inf
    %v365 = vmax.f32 %v363, %v364
    %v366 = vrot.slane %v365, 4
    %v367 = vmax.f32 %v365, %v366
    %v368 = vrot.slane %v367, 2
    %v369 = vmax.f32 %v367, %v368
    %v370 = vrot.slane %v369, 1
    %v371 = vmax.f32 %v369, %v370
    %v372 = vsel %vm161, %v361, -inf
    %v373 = vsel %vm161, %v362, -inf
    %v374 = vmax.f32 %v372, %v373
    %v375 = vrot.slane %v374, 4
    %v376 = vmax.f32 %v374, %v375
    %v377 = vrot.slane %v376, 2
    %v378 = vmax.f32 %v376, %v377
    %v379 = vrot.slane %v378, 1
    %v380 = vmax.f32 %v378, %v379
    %vm383 = vcmask 1041409
    %v384 = vsel %vm383, %v380, %v371
    %385 = vrot.lane.b32.xlu0 %v384, 32
    %v386 = vpop.permute.xlu0 %385
    %v388 = vsel %vm161, %v320, %v386
    %v389 = vld [vmem:[%s13] sm:$0xff]
    %v390 = vld [vmem:[%s13 + $0x8] sm:$0xff]
    %v391 = vld [vmem:[%s13 + $0x10] sm:$0xff]
    %v392 = vld [vmem:[%s13 + $0x18] sm:$0xff]
    %v393 = vld [vmem:[%s13 + $0x20] sm:$0xff]
    %v394 = vld [vmem:[%s13 + $0x28] sm:$0xff]
    %v395 = vld [vmem:[%s13 + $0x30] sm:$0xff]
    %v396 = vld [vmem:[%s13 + $0x38] sm:$0xff]
    %v397 = vld [vmem:[%s14] sm:$0x1]
    %v399 = vperm.slane %v397, 0
    %vm401 = vcmask 523264
    %v403 = vsel %vm401, %v388, 0
    %405 = vmatpush.msra.mxu0 0.0
    %406 = vmatpush.msra.mxu0 0.0
    %407 = vmatpush.msra.mxu0 0.0
    %408 = vmatpush.msra.mxu0 0.0
    %409 = vmatpush.msra.mxu0 0.0
    %410 = vmatpush.msra.mxu0 0.0
    %411 = vmatpush.msra.mxu0 0.0
    %412 = vmatpush.msra.mxu0 0.0
    %413 = vmatpush.msra.mxu0 %v396
    %414 = vmatpush.msra.mxu0 %v395
    %415 = vmatpush.msra.mxu0 %v394
    %416 = vmatpush.msra.mxu0 %v393
    %417 = vmatpush.msra.mxu0 %v392
    %418 = vmatpush.msra.mxu0 %v391
    %419 = vmatpush.msra.mxu0 %v390
    %420 = vmatpush.msra.mxu0 %v389
    %421 = vmatmul.f32.gmra.mxu0 %v403
    %v422 = vpop.f32.mrf.mxu0
    %v423 = vadd.f32 %v399, %v422
    %424 = vdwg.mxu0
    %s425 = sld [smem:[#allocation2]]
    %s426 = sld [smem:[#allocation2 + $0x1]]
    %v427 = vstv %s425
    %v428 = vmul.f32 %v427, %v423
    %v429 = vstv %s426
    %v430 = vmul.f32 %v429, %v423
    %432 = vrot.lane.b32.xlu0 %v430, 124
    %v433 = vpop.permute.xlu0 %432
    %v435 = vadd.f32 %v428, %v433
    %437 = vrot.lane.b32.xlu0 %v423, 4
    %v438 = vpop.permute.xlu0 %437
    %441 = vrot.lane.b32.xlu0 %v320, 12
    %v442 = vpop.permute.xlu0 %441
    %444 = vrot.lane.b32.xlu0 %v384, 44
    %v445 = vpop.permute.xlu0 %444
    %vm447 = vcmask 31744
    %v448 = vsel %vm447, %v435, %v438
    %v449 = vsel %vm121, %v448, %v438
    %vm450 = vcmask 97280
    %v451 = vsel %vm450, %v449, %v442
    %vm452 = vcmask 359424
    %v453 = vsel %vm452, %v451, %v445
    %vm454 = vcmask 621568
    %v455 = vsel %vm454, %v453, 0.0
    %456 = vst [vmem:[#allocation7] sm:$0x3] %v455
    // Predicated region
    $region70: #{tpu_custom_call.1} parent=1 // pred_check
      _
    $region71: #{tpu_custom_call.1} parent=1 // pred_check_branch
      %458 = sbr.rel (0) target = $region73
    $region72: #{tpu_custom_call.1} parent=1 // pred_region
      %460 = vsyncadd [#allocation4], 0
      %s462 = sshll.u32 [#allocation7], 4
      %s463 = int_to_ptr.vmem [resolvable:$true] %s462
      %s464 = sshll.u32 %s15, 4
      %s465 = int_to_ptr.hbm [resolvable:$true] %s464
      %467 = dma.vmem_to_hbm [thread:$0]  %s463, 32, %s465, [#allocation4]
    $region73: #{tpu_custom_call.1} parent=1 // pred_fallthru
      _
    // Predicated region
    $region74: #{tpu_custom_call.1} parent=1 // pred_check
      _
    $region75: #{tpu_custom_call.1} parent=1 // pred_check_branch
      %469 = sbr.rel (0) target = $region77
    $region76: #{tpu_custom_call.1} parent=1 // pred_region
      %471 = dma.done [#allocation4], 32
    $region77: #{tpu_custom_call.1} parent=1 // pred_fallthru
      _
    %472 = vsyncpa [#allocation3], 1
    %473 = vsyncpa [#allocation4], 1
    %474 = vsyncpa [#allocation5], 1

</llo_original>
